<compile_context>
chip_gen: v5e
topology: v5e:2x2
jax: 0.10.0
libtpu: 0.0.40
codegen_flags: <defaults>
</compile_context>

<pallas_src>
import functools
import warnings

import jax
import jax.numpy as jnp
from jax.experimental import pallas as pl
from jax.experimental.pallas import tpu as pltpu


_LANE_CANDIDATES = (8192, 4096, 2048, 1024, 512, 256, 128)
_ROW_UNIT = 32                          # sublane-safe row-tile unit for f32 / bf16 / int8
_SINGLE_BLOCK_BYTES = 1 * 1024 * 1024   # below this a single block is fine (overhead-dominated)
_MIN_GRID = 8                           # >= 4 pipelined steps per TensorCore on a 2-TC v7x


def _round_up(n, m):
    return -(-n // m) * m


def _chip_config():
    """Per-generation (block_bytes, vmem_limit_bytes, bf16_native_compute)."""
    try:
        kind = jax.devices()[0].device_kind.lower()
    except Exception:
        kind = ""
    if "v5" in kind:                                        # v5e/v5p: no bf16 VPU/EUP
        return 2 * 1024 * 1024, 32 * 1024 * 1024, False
    if "v6" in kind or "trillium" in kind:                  # v6e: 128 MiB VMEM
        return 4 * 1024 * 1024, 32 * 1024 * 1024, True
    if "v7" in kind or "7x" in kind or "ironwood" in kind:  # v7x: 64 MiB VMEM, 3.2 TB/s
        return 4 * 1024 * 1024, 48 * 1024 * 1024, True
    # Unknown / older generation: conservative defaults, safe everywhere.
    return 2 * 1024 * 1024, 32 * 1024 * 1024, False


_BLOCK_BYTES, _VMEM_LIMIT, _BF16_NATIVE = _chip_config()


def _silu_kernel(x_ref, o_ref, *, compute_dtype):
    # x * sigmoid(x); pure VPU/EUP work, hidden under the HBM DMA roofline.
    x = x_ref[...].astype(compute_dtype)
    o_ref[...] = (x * jax.nn.sigmoid(x)).astype(o_ref.dtype)


def _silu_2d(x2d, *, donate):
    """Run the elementwise kernel over a lane-aligned 2D slab (rows, lanes)."""
    n_rows, lw = x2d.shape
    itemsize = jnp.dtype(x2d.dtype).itemsize
    row_bytes = lw * itemsize
    total_bytes = n_rows * row_bytes

    # bf16 compute where the chip has a bf16 VPU/EUP; f32 otherwise (and for f32 inputs).
    if x2d.dtype == jnp.bfloat16 and _BF16_NATIVE:
        compute_dtype = jnp.bfloat16
    else:
        compute_dtype = jnp.float32

    if total_bytes <= _SINGLE_BLOCK_BYTES or n_rows <= _ROW_UNIT:
        tr = n_rows                      # tiny input: single block (block == full dim is legal)
    else:
        # Big lane-dense blocks, but keep >= _MIN_GRID steps so double-buffering and
        # the v7x two-TensorCore split actually engage. Ragged last block is masked.
        tr_big = max(_ROW_UNIT, (_BLOCK_BYTES // row_bytes) // _ROW_UNIT * _ROW_UNIT)
        tr_min_grid = max(_ROW_UNIT, _round_up(pl.cdiv(n_rows, _MIN_GRID), _ROW_UNIT))
        tr = min(tr_big, tr_min_grid)

    grid = (pl.cdiv(n_rows, tr),)

    return pl.pallas_call(
        functools.partial(_silu_kernel, compute_dtype=compute_dtype),
        out_shape=jax.ShapeDtypeStruct((n_rows, lw), x2d.dtype),
        grid_spec=pltpu.PrefetchScalarGridSpec(
            num_scalar_prefetch=0,
            grid=grid,
            in_specs=[pl.BlockSpec((tr, lw), lambda i: (i, 0))],
            out_specs=pl.BlockSpec((tr, lw), lambda i: (i, 0)),
        ),
        compiler_params=pltpu.CompilerParams(
            # TODO(synk): if profiling on v7x shows only one TC active, switch this
            # axis to pltpu.CORE_PARALLEL.
            dimension_semantics=("parallel",),
            vmem_limit_bytes=_VMEM_LIMIT,
        ),
        input_output_aliases=({0: 0} if donate else {}),
    )(x2d)


def _silu_jnp(x_flat):
    xf = x_flat.astype(jnp.float32)
    return (xf * jax.nn.sigmoid(xf)).astype(x_flat.dtype)


def _hswish_impl(x, *, donate):
    orig_shape = x.shape
    total = x.size
    if total == 0:
        return x
    x_flat = jnp.ravel(x)                # free layout op for a contiguous array under jit

    lw = next((c for c in _LANE_CANDIDATES if total % c == 0), None)
    if lw is not None:
        y = _silu_2d(x_flat.reshape(total // lw, lw), donate=donate)
        return y.reshape(orig_shape)

    # Ragged total (not a multiple of 128): kernel on the largest 128-aligned prefix,
    # tiny (<128 element) tail in plain jnp. One concat instead of pad + full slice.
    main = (total // 128) * 128
    if main == 0:
        return _silu_jnp(x_flat).reshape(orig_shape)
    lw_main = next(c for c in _LANE_CANDIDATES if main % c == 0)
    head = _silu_2d(x_flat[:main].reshape(main // lw_main, lw_main), donate=donate)
    tail = _silu_jnp(x_flat[main:])
    return jnp.concatenate([head.reshape(-1), tail]).reshape(orig_shape)


_hswish_jit = jax.jit(functools.partial(_hswish_impl, donate=False))
_hswish_jit_donate = jax.jit(functools.partial(_hswish_impl, donate=True),
                             donate_argnums=(0,))


def hswish(x: jax.Array, *, check_nan: bool = False, donate: bool = False) -> jax.Array:
    """Elementwise x * sigmoid(x) (MBFC Hswish with use_hard=False) via Pallas TPU.

    donate=True donates x at the jit boundary (caller must not reuse x) and aliases
    it to the kernel output. check_nan=True mirrors the torch NaN guard; it is
    opt-in because it forces a device->host sync plus an extra pass over y.
    """
    y = _hswish_jit_donate(x) if donate else _hswish_jit(x)
    if check_nan:
        if bool(jax.device_get(jnp.isnan(y).any())):
            raise ValueError("NaN detected in Hswish output")
    return y


if __name__ == "__main__":
    key = jax.random.PRNGKey(0)
    k1, k2, k3, k4, k5 = jax.random.split(key, 5)

    # 1) Small NCHW activation (aligned, single-block path), with the NaN guard.
    x = jax.random.normal(k1, (2, 4, 16, 16), dtype=jnp.float32)
    ref = x * jax.nn.sigmoid(x)
    y = hswish(x, check_nan=True)
    jax.block_until_ready(y)
    assert y.shape == x.shape and y.dtype == x.dtype
    assert jnp.allclose(y, ref, atol=1e-6), "mismatch (aligned single-block path)"

    # 2) Medium MBFC-like activation (aligned, multi-block pipelined path).
    x2 = jax.random.normal(k2, (2, 64, 56, 56), dtype=jnp.float32)
    ref2 = x2 * jax.nn.sigmoid(x2)
    y2 = hswish(x2)
    jax.block_until_ready(y2)
    assert jnp.allclose(y2, ref2, atol=1e-6), "mismatch (aligned multi-block path)"

    # 3) Ragged total (not a multiple of 128): prefix kernel + jnp tail, no pad/slice.
    x3 = jax.random.normal(k3, (3, 5, 7, 11), dtype=jnp.float32)
    ref3 = x3 * jax.nn.sigmoid(x3)
    y3 = hswish(x3)
    jax.block_until_ready(y3)
    assert y3.shape == x3.shape and y3.dtype == x3.dtype
    assert jnp.allclose(y3, ref3, atol=1e-6), "mismatch (ragged path)"

    # 4) bf16 input (bf16 compute on v6e/v7x, f32 compute on v5e/unknown).
    x4 = jax.random.normal(k4, (2, 8, 16, 16), dtype=jnp.bfloat16)
    x4f = x4.astype(jnp.float32)
    ref4 = (x4f * jax.nn.sigmoid(x4f)).astype(jnp.bfloat16)
    y4 = hswish(x4)
    jax.block_until_ready(y4)
    assert y4.dtype == jnp.bfloat16
    assert jnp.allclose(y4.astype(jnp.float32), ref4.astype(jnp.float32),
                        atol=0.1, rtol=0.05), "mismatch (bf16 path)"

    # 5) Donated input (aliased to the kernel output); x5 is not reused afterwards.
    x5 = jax.random.normal(k5, (2, 4, 32, 32), dtype=jnp.float32)
    ref5 = x5 * jax.nn.sigmoid(x5)
    with warnings.catch_warnings():
        warnings.simplefilter("ignore")   # silence any "donated buffer not reused" note
        y5 = hswish(x5, donate=True)
    jax.block_until_ready(y5)
    assert jnp.allclose(y5, ref5, atol=1e-6), "mismatch (donated path)"

    print("KERNEL_OK")
</pallas_src>

<mosaic_0001>
module attributes {stable_mosaic.version = 11 : i64} {
  func.func @_silu_kernel(%arg0: i32, %arg1: memref<1x2048xf32, #tpu.memory_space<vmem>>, %arg2: memref<1x2048xf32, #tpu.memory_space<vmem>>) attributes {dimension_semantics = [#tpu.dimension_semantics<parallel>], iteration_bounds = array<i64: 1>, scalar_prefetch = 0 : i64, scratch_operands = 0 : i64, tpu.core_type = #tpu.core_type<tc>, window_params = [{transform_indices = @transform_0, window_bounds = array<i64: 1, 2048>}, {transform_indices = @transform_1, window_bounds = array<i64: 1, 2048>}]} {
    %c0 = arith.constant 0 : index
    %c0_0 = arith.constant 0 : index
    %0 = vector.load %arg1[%c0, %c0_0] : memref<1x2048xf32, #tpu.memory_space<vmem>>, vector<1x2048xf32>
    %1 = arith.negf %0 : vector<1x2048xf32>
    %2 = math.exp %1 : vector<1x2048xf32>
    %cst = arith.constant 1.000000e+00 : f32
    %3 = vector.broadcast %cst : f32 to vector<1x2048xf32>
    %4 = arith.addf %3, %2 : vector<1x2048xf32>
    %5 = arith.divf %3, %4 : vector<1x2048xf32>
    %6 = arith.mulf %0, %5 : vector<1x2048xf32>
    %c0_1 = arith.constant 0 : index
    %c0_2 = arith.constant 0 : index
    %7 = vector.load %arg2[%c0_1, %c0_2] : memref<1x2048xf32, #tpu.memory_space<vmem>>, vector<1x2048xf32>
    tpu.vector_store %arg2[%c0_1, %c0_2], %6 {strides = array<i32>} : memref<1x2048xf32, #tpu.memory_space<vmem>>, vector<1x2048xf32>,
    return
  }
  func.func @transform_0(%arg0: i32) -> (i32, i32) {
    %c0_i32 = arith.constant 0 : i32
    %c0_i32_0 = arith.constant 0 : i32
    return %arg0, %c0_i32 : i32, i32
  }
  func.func @transform_1(%arg0: i32) -> (i32, i32) {
    %c0_i32 = arith.constant 0 : i32
    %c0_i32_0 = arith.constant 0 : i32
    return %arg0, %c0_i32 : i32, i32
  }
}

</mosaic_0001>

<llo_original>
// kernel: _hswish_impl.1
$region0: #{_hswish_impl.1}
  #allocation0 [shape = 'u32[]', space=smem, size = 0x4, offset = 0x4, fixed_abs, tag = 'smem constant byte address 0x4 - core index']
  #allocation1 [shape = 'u32[72,128]{1,0:T(1,128)}', space=vmem, size = 0x9000, scoped, tag = 'internal scratch']
  %s0 = inlined_call_operand.vmem [shape: f32[1,2048], index: 0, kind: input, shape index: {}]
  %s1 = inlined_call_operand.vmem [shape: f32[1,2048], index: 1, kind: output, shape index: {}]
  %s2 = sld [smem:[#allocation0]]
  $region14: #{_hswish_impl.1} parent=0
    _
  %s4 = ssub.s32 1, %s2
  %s5 = scalar_select 0, %s4, %s2
  // Predicated region
  $region2: #{_hswish_impl.1} parent=0 // pred_check
    _
  $region3: #{_hswish_impl.1} parent=0 // pred_check_branch
    %7 = sbr.rel (0) target = $region5
  $region4: #{_hswish_impl.1} parent=0 // pred_region
    _
  $region5: #{_hswish_impl.1} parent=0 // pred_fallthru
    _
  %v8 = vld [vmem:[%s0] sm:$0xff]
  %v9 = vld [vmem:[%s0 + $0x8] sm:$0xff]
  %v10 = vxor.u32 %v8, 2147483648
  %v11 = vxor.u32 %v9, 2147483648
  %v12 = vmul.f32 %v10, 1.442695
  %v13 = vpow.pop %v12
  %v14 = vmul.f32 %v11, 1.442695
  %v15 = vpow.pop %v14
  %v16 = vadd.f32 %v13, 1.0
  %v17 = vadd.f32 %v15, 1.0
  %v18 = vrcp.pop %v16
  %v19 = vmul.f32 %v16, %v18
  %v20 = vsub.f32 1.0, %v19
  %v21 = vmul.f32 %v18, %v20
  %v22 = vadd.f32 %v18, %v21
  %vm23 = vweird.f32 %v16
  %vm24 = vweird.f32 %v18
  %vm25 = vmor %vm23, %vm24
  %v26 = vsel %vm25, %v18, %v22
  %v27 = vand.u32 2147483647, %v16
  %vm28 = vcmp.eq.f32.partialorder %v27, 8.507059e+37
  %v29 = vand.u32 %v16, 2147483648
  %v30 = vor.u32 1.1754944e-38, %v29
  %v31 = vsel %vm28, %v30, %v26
  %v32 = vmul.f32 1.0, %v31
  %v33 = vrcp.pop %v17
  %v34 = vmul.f32 %v17, %v33
  %v35 = vsub.f32 1.0, %v34
  %v36 = vmul.f32 %v33, %v35
  %v37 = vadd.f32 %v33, %v36
  %vm38 = vweird.f32 %v17
  %vm39 = vweird.f32 %v33
  %vm40 = vmor %vm38, %vm39
  %v41 = vsel %vm40, %v33, %v37
  %v42 = vand.u32 2147483647, %v17
  %vm43 = vcmp.eq.f32.partialorder %v42, 8.507059e+37
  %v44 = vand.u32 %v17, 2147483648
  %v45 = vor.u32 1.1754944e-38, %v44
  %v46 = vsel %vm43, %v45, %v41
  %v47 = vmul.f32 1.0, %v46
  %v48 = vmul.f32 %v8, %v32
  %v49 = vmul.f32 %v9, %v47
  %50 = vst [vmem:[%s1] sm:$0xff] %v48
  %51 = vst [vmem:[%s1 + $0x8] sm:$0xff] %v49
  // Predicated region
  $region6: #{_hswish_impl.1} parent=0 // pred_check
    _
  $region7: #{_hswish_impl.1} parent=0 // pred_check_branch
    %53 = sbr.rel (0) target = $region9
  $region8: #{_hswish_impl.1} parent=0 // pred_region
    _
  $region9: #{_hswish_impl.1} parent=0 // pred_fallthru
    _
  // Predicated region
  $region10: #{_hswish_impl.1} parent=0 // pred_check
    _
  $region11: #{_hswish_impl.1} parent=0 // pred_check_branch
    %55 = sbr.rel (0) target = $region13
  $region12: #{_hswish_impl.1} parent=0 // pred_region
    _
  $region13: #{_hswish_impl.1} parent=0 // pred_fallthru
    _

</llo_original>
